<compile_context>
chip_gen: v5e
topology: v5e:2x2
jax: 0.10.0
libtpu: 0.0.40
codegen_flags: <defaults>
</compile_context>

<pallas_src>
import math

import numpy as np
import jax
import jax.numpy as jnp
from jax.experimental import pallas as pl
from jax.experimental.pallas import tpu as pltpu

HEADS = 8  # CrossTransformer hard-codes heads = 8 (only used for the divisibility assert)


def _fused_cross_kernel(x_ref, y_ref, wvo_ref, bvo_ref, e_ref, o_ref):
    """One grid step == one (batch, spatial-tile) cell in lane-dense (C, t_tile*V) layout.

    x_ref  : (1, C, Nt)     flattened residual slab, Nt = t_tile * V
    y_ref  : (1, C, T)      per-(b, t) key/value vectors (full T resident per batch; tiny)
    wvo_ref: (C, C)         folded weight  Wo @ Wv
    bvo_ref: (C, 1)         folded bias    Wo @ bv + bo
    e_ref  : (t_tile, Nt)   0/1 expansion matrix, E[i, i*V + v] = 1
    o_ref  : (1, C, Nt)     output  z = x + broadcast_V(r)
    """
    t_tile = e_ref.shape[0]
    T = y_ref.shape[2]

    if t_tile == T:
        # Single spatial tile per batch element: static full read of y.
        y_t = y_ref[0]                                                    # (C, T)
    else:
        start = pl.multiple_of(pl.program_id(1) * t_tile, t_tile)
        y_t = y_ref[0, :, pl.ds(start, t_tile)]                           # (C, t_tile)

    # r[c, i] = sum_c' (Wo @ Wv)[c, c'] * y[b, c', t_i]
    r = jnp.dot(wvo_ref[...], y_t, preferred_element_type=jnp.float32)    # (C, t_tile)
    # Broadcast along V on the MXU: r_exp[c, i*V + v] = r[c, i]   (lane-dense result).
    r_exp = jnp.dot(r, e_ref[...], preferred_element_type=jnp.float32)    # (C, Nt)

    # One vectorized residual add + one unmasked, lane-dense store.
    o_ref[0] = (x_ref[0] + r_exp + bvo_ref[...]).astype(o_ref.dtype)


def _choose_t_tile(C, T, V, itemsize, max_block_bytes=4 << 20):
    """Largest t_tile dividing T whose (C, t_tile*V) block is 128-lane aligned and fits budget."""
    if C * T * V * itemsize <= max_block_bytes:
        return T                                   # whole (C, T*V) slab in one grid step
    best = None
    for t in range(1, T):
        if T % t or (t * V) % 128 or C * t * V * itemsize > max_block_bytes:
            continue
        best = t                                   # keep the largest valid divisor
    # TODO(synk): if V admits no 128-aligned tile dividing T, fall back to the full slab
    #             (may need a larger vmem_limit_bytes for extreme shapes).
    return best if best is not None else T


def cross_transformer_forward(x, y, params):
    """x: (B, C, T, V) float32, y: (B, C, T) float32 -> (B, C, T, V) float32."""
    B, C, T, V = x.shape
    assert C % HEADS == 0
    wq, bq, wk, bk, wv, bv, wo, bo = params
    del wq, bq, wk, bk  # provably dead: with a length-1 key axis, attn == 1 for any q/k

    hp = jax.lax.Precision.HIGHEST
    # Fold the two surviving linears (value proj then output proj):
    #   Wo @ (Wv @ y + bv) + bo  ==  (Wo @ Wv) @ y + (Wo @ bv + bo)
    wvo = jnp.dot(wo, wv, precision=hp)                        # (C, C)
    bvo = (jnp.dot(wo, bv, precision=hp) + bo).reshape(C, 1)   # (C, 1)

    itemsize = x.dtype.itemsize
    t_tile = _choose_t_tile(C, T, V, itemsize)
    n_t = T // t_tile
    Nt = t_tile * V
    N = T * V

    # 0/1 expansion matrix: column (i*V + v) selects row i, so (r @ E)[c, i*V+v] = r[c, i].
    expand = jnp.repeat(jnp.eye(t_tile, dtype=x.dtype), V, axis=1)        # (t_tile, Nt)

    # Free view: x is contiguous, so (B, C, T, V) <-> (B, C, T*V) costs nothing in HBM.
    x2 = x.reshape(B, C, N)

    # Double-buffered x/out slabs + resident small operands, with 2x headroom; capped below
    # v7x's 64 MiB physical VMEM, floored at 16 MiB.
    needed = itemsize * (4 * C * Nt + 2 * C * T + 2 * (C * C + C + t_tile * Nt))
    vmem_limit = int(min(max(2 * needed, 16 << 20), 48 << 20))

    out = pl.pallas_call(
        _fused_cross_kernel,
        out_shape=jax.ShapeDtypeStruct((B, C, N), x.dtype),
        grid=(B, n_t),
        in_specs=[
            pl.BlockSpec((1, C, Nt), lambda b, j: (b, 0, j)),     # x slab, lane-dense
            pl.BlockSpec((1, C, T), lambda b, j: (b, 0, 0)),      # y, full T per batch (tiny)
            pl.BlockSpec((C, C), lambda b, j: (0, 0)),            # folded weight (resident)
            pl.BlockSpec((C, 1), lambda b, j: (0, 0)),            # folded bias   (resident)
            pl.BlockSpec((t_tile, Nt), lambda b, j: (0, 0)),      # expansion matrix (resident)
        ],
        out_specs=pl.BlockSpec((1, C, Nt), lambda b, j: (b, 0, j)),
        compiler_params=pltpu.CompilerParams(
            dimension_semantics=("parallel", "parallel"),
            vmem_limit_bytes=vmem_limit,
        ),
    )(x2, y, wvo, bvo, expand)

    return out.reshape(B, C, T, V)


def reference_forward(x, y, params):
    """Pure-JAX reference of the exact (unfolded) PyTorch semantics, for validation."""
    B, C, T, V = x.shape
    wq, bq, wk, bk, wv, bv, wo, bo = params
    hp = jax.lax.Precision.HIGHEST
    p = jnp.transpose(x, (0, 2, 3, 1)).reshape(B * T, V, C)
    yk = jnp.transpose(y, (0, 2, 1)).reshape(B * T, C)
    vproj = jnp.dot(yk, wv.T, precision=hp) + bv               # (N, C)
    # entmax15 over a length-1 key axis == 1 -> attention output broadcasts v over V queries.
    o_attn = jnp.broadcast_to(vproj[:, None, :], (B * T, V, C))
    out = jnp.dot(o_attn, wo.T, precision=hp) + bo + p
    return jnp.transpose(out.reshape(B, T, V, C), (0, 3, 1, 2))


def init_params(key, C):
    """Deterministic init matching nn.Linear(inputs, inputs) shapes (PyTorch-style uniform)."""
    ks = jax.random.split(key, 8)
    bound = 1.0 / math.sqrt(C)

    def lin(kw, kb):
        w = jax.random.uniform(kw, (C, C), jnp.float32, -bound, bound)   # (out, in)
        b = jax.random.uniform(kb, (C,), jnp.float32, -bound, bound)
        return w, b

    wq, bq = lin(ks[0], ks[1])
    wk, bk = lin(ks[2], ks[3])
    wv, bv = lin(ks[4], ks[5])
    wo, bo = lin(ks[6], ks[7])
    return (wq, bq, wk, bk, wv, bv, wo, bo)


if __name__ == "__main__":
    key = jax.random.PRNGKey(0)
    kx, ky, kp = jax.random.split(key, 3)

    B, C, T, V = 2, 32, 4, 16          # inputs = C = 32, divisible by heads = 8
    x = jax.random.normal(kx, (B, C, T, V), dtype=jnp.float32)
    y = jax.random.normal(ky, (B, C, T), dtype=jnp.float32)
    params = init_params(kp, C)

    z = cross_transformer_forward(x, y, params)
    jax.block_until_ready(z)

    z_ref = reference_forward(x, y, params)
    assert z.shape == (B, C, T, V)
    # Tolerance covers the weight-fold reassociation plus MXU f32 pass differences.
    np.testing.assert_allclose(np.asarray(z), np.asarray(z_ref), rtol=5e-3, atol=5e-3)

    print("KERNEL_OK")
</pallas_src>

<mosaic_0001>
module attributes {stable_mosaic.version = 11 : i64} {
  func.func @_fused_cross_kernel(%arg0: i32, %arg1: i32, %arg2: memref<1x32x64xf32, #tpu.memory_space<vmem>>, %arg3: memref<1x32x4xf32, #tpu.memory_space<vmem>>, %arg4: memref<32x32xf32, #tpu.memory_space<vmem>>, %arg5: memref<32x1xf32, #tpu.memory_space<vmem>>, %arg6: memref<4x64xf32, #tpu.memory_space<vmem>>, %arg7: memref<1x32x64xf32, #tpu.memory_space<vmem>>) attributes {dimension_semantics = [#tpu.dimension_semantics<parallel>, #tpu.dimension_semantics<parallel>], iteration_bounds = array<i64: 2, 1>, scalar_prefetch = 0 : i64, scratch_operands = 0 : i64, tpu.core_type = #tpu.core_type<tc>, window_params = [{transform_indices = @transform_0, window_bounds = array<i64: 1, 32, 64>}, {transform_indices = @transform_1, window_bounds = array<i64: 1, 32, 4>}, {pipeline_mode = #tpu.pipeline_mode<synchronous>, transform_indices = @transform_2, window_bounds = array<i64: 32, 32>}, {pipeline_mode = #tpu.pipeline_mode<synchronous>, transform_indices = @transform_3, window_bounds = array<i64: 32, 1>}, {pipeline_mode = #tpu.pipeline_mode<synchronous>, transform_indices = @transform_4, window_bounds = array<i64: 4, 64>}, {transform_indices = @transform_5, window_bounds = array<i64: 1, 32, 64>}]} {
    %c0 = arith.constant 0 : index
    %c0_0 = arith.constant 0 : index
    %c0_1 = arith.constant 0 : index
    %0 = vector.load %arg3[%c0, %c0_0, %c0_1] : memref<1x32x4xf32, #tpu.memory_space<vmem>>, vector<1x32x4xf32>
    %1 = vector.shape_cast %0 : vector<1x32x4xf32> to vector<32x4xf32>
    %c0_2 = arith.constant 0 : index
    %c0_3 = arith.constant 0 : index
    %2 = vector.load %arg4[%c0_2, %c0_3] : memref<32x32xf32, #tpu.memory_space<vmem>>, vector<32x32xf32>
    %cst = arith.constant dense<0.000000e+00> : vector<32x4xf32>
    %3 = tpu.matmul %2, %1, %cst {dimension_numbers = #tpu.dot_dimension_numbers<[1], [0], [0], [1], [0, 0, 1, 1], [], []>} : vector<32x32xf32>, vector<32x4xf32>, vector<32x4xf32> -> vector<32x4xf32>
    %c0_4 = arith.constant 0 : index
    %c0_5 = arith.constant 0 : index
    %4 = vector.load %arg6[%c0_4, %c0_5] : memref<4x64xf32, #tpu.memory_space<vmem>>, vector<4x64xf32>
    %cst_6 = arith.constant dense<0.000000e+00> : vector<32x64xf32>
    %5 = tpu.matmul %3, %4, %cst_6 {dimension_numbers = #tpu.dot_dimension_numbers<[1], [0], [0], [1], [0, 0, 1, 1], [], []>} : vector<32x4xf32>, vector<4x64xf32>, vector<32x64xf32> -> vector<32x64xf32>
    %c0_7 = arith.constant 0 : index
    %c0_8 = arith.constant 0 : index
    %c0_9 = arith.constant 0 : index
    %6 = vector.load %arg2[%c0_7, %c0_8, %c0_9] : memref<1x32x64xf32, #tpu.memory_space<vmem>>, vector<1x32x64xf32>
    %7 = vector.shape_cast %6 : vector<1x32x64xf32> to vector<32x64xf32>
    %8 = arith.addf %7, %5 : vector<32x64xf32>
    %c0_10 = arith.constant 0 : index
    %c0_11 = arith.constant 0 : index
    %9 = vector.load %arg5[%c0_10, %c0_11] : memref<32x1xf32, #tpu.memory_space<vmem>>, vector<32x1xf32>
    %10 = vector.broadcast %9 : vector<32x1xf32> to vector<32x64xf32>
    %11 = arith.addf %8, %10 : vector<32x64xf32>
    %c0_12 = arith.constant 0 : index
    %c0_13 = arith.constant 0 : index
    %c0_14 = arith.constant 0 : index
    %12 = vector.load %arg7[%c0_12, %c0_13, %c0_14] : memref<1x32x64xf32, #tpu.memory_space<vmem>>, vector<1x32x64xf32>
    %13 = vector.shape_cast %12 : vector<1x32x64xf32> to vector<32x64xf32>
    %14 = vector.shape_cast %11 : vector<32x64xf32> to vector<1x32x64xf32>
    tpu.vector_store %arg7[%c0_12, %c0_13, %c0_14], %14 {strides = array<i32>} : memref<1x32x64xf32, #tpu.memory_space<vmem>>, vector<1x32x64xf32>,
    return
  }
  func.func @transform_0(%arg0: i32, %arg1: i32) -> (i32, i32, i32) {
    %c0_i32 = arith.constant 0 : i32
    %c0_i32_0 = arith.constant 0 : i32
    return %arg0, %c0_i32, %arg1 : i32, i32, i32
  }
  func.func @transform_1(%arg0: i32, %arg1: i32) -> (i32, i32, i32) {
    %c0_i32 = arith.constant 0 : i32
    %c0_i32_0 = arith.constant 0 : i32
    %c0_i32_1 = arith.constant 0 : i32
    return %arg0, %c0_i32, %c0_i32_0 : i32, i32, i32
  }
  func.func @transform_2(%arg0: i32, %arg1: i32) -> (i32, i32) {
    %c0_i32 = arith.constant 0 : i32
    %c0_i32_0 = arith.constant 0 : i32
    %c0_i32_1 = arith.constant 0 : i32
    return %c0_i32, %c0_i32_0 : i32, i32
  }
  func.func @transform_3(%arg0: i32, %arg1: i32) -> (i32, i32) {
    %c0_i32 = arith.constant 0 : i32
    %c0_i32_0 = arith.constant 0 : i32
    %c0_i32_1 = arith.constant 0 : i32
    return %c0_i32, %c0_i32_0 : i32, i32
  }
  func.func @transform_4(%arg0: i32, %arg1: i32) -> (i32, i32) {
    %c0_i32 = arith.constant 0 : i32
    %c0_i32_0 = arith.constant 0 : i32
    %c0_i32_1 = arith.constant 0 : i32
    return %c0_i32, %c0_i32_0 : i32, i32
  }
  func.func @transform_5(%arg0: i32, %arg1: i32) -> (i32, i32, i32) {
    %c0_i32 = arith.constant 0 : i32
    %c0_i32_0 = arith.constant 0 : i32
    return %arg0, %c0_i32, %arg1 : i32, i32, i32
  }
}

</mosaic_0001>

<llo_original>
// kernel: tpu_custom_call.1
$region0: #{tpu_custom_call.1}
  #allocation0 [shape = 'u32[]', space=smem, size = 0x4, offset = 0x4, fixed_abs, tag = 'smem constant byte address 0x4 - core index']
  #allocation1 [shape = 'u32[72,128]{1,0:T(1,128)}', space=vmem, size = 0x9000, scoped, tag = 'internal scratch']
  %s0 = inlined_call_operand.vmem [shape: f32[2,32,64], index: 0, kind: input, shape index: {}]
  %s1 = inlined_call_operand.vmem [shape: f32[2,32,4], index: 1, kind: input, shape index: {}]
  %s2 = inlined_call_operand.vmem [shape: f32[32,32], index: 2, kind: input, shape index: {}]
  %s3 = inlined_call_operand.vmem [shape: f32[32,1], index: 3, kind: input, shape index: {}]
  %s4 = inlined_call_operand.hbm [shape: f32[4,64], index: 4, kind: input, shape index: {}]
  %s5 = inlined_call_operand.hbm [shape: f32[2,32,64], index: 5, kind: output, shape index: {}]
  %s6 = sld [smem:[#allocation0]]
  $region57: #{tpu_custom_call.1} parent=0
    _
  %s8 = ssub.s32 1, %s6
  %s9 = scalar_select 0, %s8, %s6
  $region1: #{tpu_custom_call.1} parent=0
    #allocation2 [shape = 'u8[2048]{0}', space=vmem, size = 0x800, scoped, tag = 'input window, operand 4, single buffered']
    #allocation3 [shape = 's32[2]{0}', space=sflag, size = 0x8, scoped, tag = 'scoped memory for tpu_custom_call.1']
    #allocation4 [shape = 's32[2]{0}', space=sflag, size = 0x8, scoped, tag = 'scoped memory for tpu_custom_call.1']
    #allocation5 [shape = 'u8[32768]{0}', space=vmem, size = 0x8000, scoped, tag = 'output window, operand 0']
    %10 = vsyncpa [#allocation3], 0
    %11 = vsyncpa [#allocation4], 0
    %s12 = scalar_lea.sflag [#allocation4], 1
    %13 = vsyncpa %s12, 0
    loop: start=0, step=1, limit=4
    $region2: #{tpu_custom_call.1} parent=1 // loop_pre_header
      _
    $region3: #{tpu_custom_call.1} parent=1 // loop_header
      %s15 = sphi 0, %s19
      %p16 = scmp.ge.s32.totalorder %s15, 4
      %s22 = sphi 0, %s34
      %s23 = sphi 0, %s30
      %s24 = sphi 0, %s22
      %s25 = sphi 0, %s23
      %s26 = sphi 0, %s24
      %s27 = sphi 0, %s25
      %s39 = sphi 0, %s41
      %s42 = sphi 0, %s39
      %s43 = sphi 0, %s42
      %s59 = sphi 0, %s43
      %s65 = sphi 0, %s67
      %s68 = sphi 0, %s65
      %s69 = sphi 0, %s68
      %s85 = sphi 0, %s69
      %s89 = sphi 0, %s89
      %s91 = sphi 0, %s89
      %s92 = sphi 0, %s91
      %s106 = sphi 0, %s92
      %s110 = sphi 0, %s110
      %s112 = sphi 0, %s110
      %s113 = sphi 0, %s112
      %s127 = sphi 0, %s113
      %s131 = sphi 0, %s131
      %s133 = sphi 0, %s131
      %s134 = sphi 0, %s133
      %s148 = sphi 0, %s134
      %s156 = sphi 0, %s158
      %s159 = sphi 0, %s156
      %s160 = sphi 0, %s159
      %s176 = sphi 0, %s160
    $region4: #{tpu_custom_call.1} parent=1 // loop_header_branch
      %18 = sbr.rel (%p16) target = $region8
    $region5: #{tpu_custom_call.1} parent=1 // loop_body
      %s20 = ssub.s32 %s15, 1
      %s21 = ssub.s32 %s15, 2
      %s28 = sadd.s32 1, %s23
      %p29 = scmp.ge.s32.totalorder %s28, 1
      %s30 = scalar_select %p29, 0, %s28
      %s31 = sadd.s32 1, %s22
      %s32 = scalar_select %p29, %s31, %s22
      %p33 = scmp.ge.s32.totalorder %s32, 2
      %s34 = scalar_select %p33, 0, %s32
      %s35 = ssub.s32 %s22, %s34
      %s36 = ssub.s32 %s23, %s30
      %s37 = sor.u32 %s35, %s36
      %p38 = scmp.eq.s32.totalorder %s37, 0
      %s40 = sadd.s32 %s39, 1
      %s41 = scalar_select %p38, %s39, %s40
      %p44 = pneg %p38
      %p45 = scmp.eq.s32.totalorder %s15, 1
      %p46 = por %p44, %p45
      %p47 = scmp.ne.s32.totalorder %s39, %s42
      %p48 = scmp.eq.s32.totalorder %s15, 0
      %p49 = por %p47, %p48
      %p50 = scmp.ne.s32.totalorder %s39, %s42
      %p51 = scmp.eq.s32.totalorder %s20, 1
      %p52 = por %p50, %p51
      %p53 = scmp.ne.s32.totalorder %s42, %s43
      %p54 = scmp.eq.s32.totalorder %s20, 0
      %p55 = por %p53, %p54
      %p56 = scmp.ne.s32.totalorder %s42, %s43
      %p57 = scmp.eq.s32.totalorder %s21, 1
      %p58 = por %p56, %p57
      %p60 = scmp.ne.s32.totalorder %s43, %s59
      %p61 = scmp.eq.s32.totalorder %s21, 0
      %p62 = por %p60, %p61
      %s63 = ssub.s32 %s22, %s34
      %p64 = scmp.eq.s32.totalorder %s63, 0
      %s66 = sadd.s32 %s65, 1
      %s67 = scalar_select %p64, %s65, %s66
      %p70 = pneg %p64
      %p71 = scmp.eq.s32.totalorder %s15, 1
      %p72 = por %p70, %p71
      %p73 = scmp.ne.s32.totalorder %s65, %s68
      %p74 = scmp.eq.s32.totalorder %s15, 0
      %p75 = por %p73, %p74
      %p76 = scmp.ne.s32.totalorder %s65, %s68
      %p77 = scmp.eq.s32.totalorder %s20, 1
      %p78 = por %p76, %p77
      %p79 = scmp.ne.s32.totalorder %s68, %s69
      %p80 = scmp.eq.s32.totalorder %s20, 0
      %p81 = por %p79, %p80
      %p82 = scmp.ne.s32.totalorder %s68, %s69
      %p83 = scmp.eq.s32.totalorder %s21, 1
      %p84 = por %p82, %p83
      %p86 = scmp.ne.s32.totalorder %s69, %s85
      %p87 = scmp.eq.s32.totalorder %s21, 0
      %p88 = por %p86, %p87
      %s90 = sadd.s32 %s89, 1
      %p93 = scmp.eq.s32.totalorder %s15, 1
      %p94 = scmp.ne.s32.totalorder %s89, %s91
      %p95 = scmp.eq.s32.totalorder %s15, 0
      %p96 = por %p94, %p95
      %p97 = scmp.ne.s32.totalorder %s89, %s91
      %p98 = scmp.eq.s32.totalorder %s20, 1
      %p99 = por %p97, %p98
      %p100 = scmp.ne.s32.totalorder %s91, %s92
      %p101 = scmp.eq.s32.totalorder %s20, 0
      %p102 = por %p100, %p101
      %p103 = scmp.ne.s32.totalorder %s91, %s92
      %p104 = scmp.eq.s32.totalorder %s21, 1
      %p105 = por %p103, %p104
      %p107 = scmp.ne.s32.totalorder %s92, %s106
      %p108 = scmp.eq.s32.totalorder %s21, 0
      %p109 = por %p107, %p108
      %s111 = sadd.s32 %s110, 1
      %p114 = scmp.eq.s32.totalorder %s15, 1
      %p115 = scmp.ne.s32.totalorder %s110, %s112
      %p116 = scmp.eq.s32.totalorder %s15, 0
      %p117 = por %p115, %p116
      %p118 = scmp.ne.s32.totalorder %s110, %s112
      %p119 = scmp.eq.s32.totalorder %s20, 1
      %p120 = por %p118, %p119
      %p121 = scmp.ne.s32.totalorder %s112, %s113
      %p122 = scmp.eq.s32.totalorder %s20, 0
      %p123 = por %p121, %p122
      %p124 = scmp.ne.s32.totalorder %s112, %s113
      %p125 = scmp.eq.s32.totalorder %s21, 1
      %p126 = por %p124, %p125
      %p128 = scmp.ne.s32.totalorder %s113, %s127
      %p129 = scmp.eq.s32.totalorder %s21, 0
      %p130 = por %p128, %p129
      %s132 = sadd.s32 %s131, 1
      %p135 = scmp.eq.s32.totalorder %s15, 1
      %p136 = scmp.ne.s32.totalorder %s131, %s133
      %p137 = scmp.eq.s32.totalorder %s15, 0
      %p138 = por %p136, %p137
      %p139 = scmp.ne.s32.totalorder %s131, %s133
      %p140 = scmp.eq.s32.totalorder %s20, 1
      %p141 = por %p139, %p140
      %p142 = scmp.ne.s32.totalorder %s133, %s134
      %p143 = scmp.eq.s32.totalorder %s20, 0
      %p144 = por %p142, %p143
      %p145 = scmp.ne.s32.totalorder %s133, %s134
      %p146 = scmp.eq.s32.totalorder %s21, 1
      %p147 = por %p145, %p146
      %p149 = scmp.ne.s32.totalorder %s134, %s148
      %p150 = scmp.eq.s32.totalorder %s21, 0
      %p151 = por %p149, %p150
      %s152 = ssub.s32 %s22, %s34
      %s153 = ssub.s32 %s23, %s30
      %s154 = sor.u32 %s152, %s153
      %p155 = scmp.eq.s32.totalorder %s154, 0
      %s157 = sadd.s32 %s156, 1
      %s158 = scalar_select %p155, %s156, %s157
      %p161 = pneg %p155
      %p162 = scmp.eq.s32.totalorder %s15, 1
      %p163 = por %p161, %p162
      %p164 = scmp.ne.s32.totalorder %s156, %s159
      %p165 = scmp.eq.s32.totalorder %s15, 0
      %p166 = por %p164, %p165
      %p167 = scmp.ne.s32.totalorder %s156, %s159
      %p168 = scmp.eq.s32.totalorder %s20, 1
      %p169 = por %p167, %p168
      %p170 = scmp.ne.s32.totalorder %s159, %s160
      %p171 = scmp.eq.s32.totalorder %s20, 0
      %p172 = por %p170, %p171
      %p173 = scmp.ne.s32.totalorder %s159, %s160
      %p174 = scmp.eq.s32.totalorder %s21, 1
      %p175 = por %p173, %p174
      %p177 = scmp.ne.s32.totalorder %s160, %s176
      %p178 = scmp.eq.s32.totalorder %s21, 0
      %p179 = por %p177, %p178
      %p180 = scmp.le.s32.totalorder 1, %s15
      %p181 = scmp.lt.s32.totalorder %s15, 3
      %p182 = pnand %p180, %p181
      %p183 = pneg %p182
      // Predicated region
      $region9: #{tpu_custom_call.1} parent=5 // pred_check
        _
      $region10: #{tpu_custom_call.1} parent=5 // pred_check_branch
        %185 = sbr.rel (%p182) target = $region12
      $region11: #{tpu_custom_call.1} parent=5 // pred_region
        %s186 = ssub.s32 %s15, 1
        // Predicated region
        $region13: #{tpu_custom_call.1} parent=11 // pred_check
          %p187 = pneg %p102
        $region14: #{tpu_custom_call.1} parent=11 // pred_check_branch
          %189 = sbr.rel (%p187) target = $region16
        $region15: #{tpu_custom_call.1} parent=11 // pred_region
          _
        $region16: #{tpu_custom_call.1} parent=11 // pred_fallthru
          _
        // Predicated region
        $region17: #{tpu_custom_call.1} parent=11 // pred_check
          %p190 = pneg %p123
        $region18: #{tpu_custom_call.1} parent=11 // pred_check_branch
          %192 = sbr.rel (%p190) target = $region20
        $region19: #{tpu_custom_call.1} parent=11 // pred_region
          _
        $region20: #{tpu_custom_call.1} parent=11 // pred_fallthru
          _
        // Predicated region
        $region21: #{tpu_custom_call.1} parent=11 // pred_check
          %p193 = pneg %p144
        $region22: #{tpu_custom_call.1} parent=11 // pred_check_branch
          %195 = sbr.rel (%p193) target = $region24
        $region23: #{tpu_custom_call.1} parent=11 // pred_region
          %197 = vsyncadd [#allocation3], 0
          %s199 = sshll.u32 %s4, 4
          %s200 = int_to_ptr.hbm [resolvable:$true] %s199
          %s201 = sshll.u32 [#allocation2], 4
          %s202 = int_to_ptr.vmem [resolvable:$true] %s201
          %204 = dma.hbm_to_vmem [thread:$0]  %s200, 64, %s202, [#allocation3]
        $region24: #{tpu_custom_call.1} parent=11 // pred_fallthru
          _
      $region12: #{tpu_custom_call.1} parent=5 // pred_fallthru
        _
      %p205 = scmp.lt.s32.totalorder %s15, 2
      // Predicated region
      $region25: #{tpu_custom_call.1} parent=5 // pred_check
        %p206 = pneg %p205
      $region26: #{tpu_custom_call.1} parent=5 // pred_check_branch
        %208 = sbr.rel (%p206) target = $region28
      $region27: #{tpu_custom_call.1} parent=5 // pred_region
        // Predicated region
        $region29: #{tpu_custom_call.1} parent=27 // pred_check
          %p209 = pneg %p49
        $region30: #{tpu_custom_call.1} parent=27 // pred_check_branch
          %211 = sbr.rel (%p209) target = $region32
        $region31: #{tpu_custom_call.1} parent=27 // pred_region
          %p212 = scmp.lt.s32.totalorder %s22, 1
          %s213 = scalar_select %p212, %s22, 1
          %p214 = scmp.lt.s32.totalorder %s23, 0
          %s215 = scalar_select %p214, %s23, 0
          %s216 = smul.addr %s213, 4
          %s217 = sadd.s32 %s215, %s216
          %s218 = smul.addr %s217, 8
          %s219 = scalar_lea.vmem %s0, %s218
        $region32: #{tpu_custom_call.1} parent=27 // pred_fallthru
          _
        // Predicated region
        $region33: #{tpu_custom_call.1} parent=27 // pred_check
          %p220 = pneg %p75
        $region34: #{tpu_custom_call.1} parent=27 // pred_check_branch
          %222 = sbr.rel (%p220) target = $region36
        $region35: #{tpu_custom_call.1} parent=27 // pred_region
          %p223 = scmp.lt.s32.totalorder %s22, 1
          %s224 = scalar_select %p223, %s22, 1
          %s225 = smul.addr %s224, 4
          %s226 = smul.addr %s225, 8
          %s227 = scalar_lea.vmem %s1, %s226
        $region36: #{tpu_custom_call.1} parent=27 // pred_fallthru
          _
      $region28: #{tpu_custom_call.1} parent=5 // pred_fallthru
        _
      %p228 = scmp.le.s32.totalorder 1, %s15
      %p229 = scmp.lt.s32.totalorder %s15, 3
      %p230 = pnand %p228, %p229
      %p231 = pneg %p230
      // Predicated region
      $region37: #{tpu_custom_call.1} parent=5 // pred_check
        _
      $region38: #{tpu_custom_call.1} parent=5 // pred_check_branch
        %233 = sbr.rel (%p230) target = $region40
      $region39: #{tpu_custom_call.1} parent=5 // pred_region
        %s234 = ssub.s32 %s15, 1
        // Predicated region
        $region41: #{tpu_custom_call.1} parent=39 // pred_check
          %p235 = pneg %p144
        $region42: #{tpu_custom_call.1} parent=39 // pred_check_branch
          %237 = sbr.rel (%p235) target = $region44
        $region43: #{tpu_custom_call.1} parent=39 // pred_region
          %239 = dma.done [#allocation3], 64
        $region44: #{tpu_custom_call.1} parent=39 // pred_fallthru
          _
        %p240 = scmp.lt.s32.totalorder %s24, 1
        %s241 = scalar_select %p240, %s24, 1
        %p242 = scmp.lt.s32.totalorder %s25, 0
        %s243 = scalar_select %p242, %s25, 0
        %s244 = smul.addr %s241, 4
        %s245 = sadd.s32 %s243, %s244
        %s246 = smul.addr %s245, 8
        %s247 = scalar_lea.vmem %s0, %s246
        %p248 = pneg %p55
        %p249 = pneg %p52
        %p250 = scmp.lt.s32.totalorder %s24, 1
        %s251 = scalar_select %p250, %s24, 1
        %s252 = smul.addr %s251, 4
        %s253 = smul.addr %s252, 8
        %s254 = scalar_lea.vmem %s1, %s253
        %p255 = pneg %p81
        %p256 = pneg %p78
        %p257 = pneg %p102
        %p258 = pneg %p99
        %p259 = pneg %p123
        %p260 = pneg %p120
        %p261 = pneg %p144
        %p262 = pneg %p141
        %p263 = pneg %p172
        %p264 = pneg %p169
        %s265 = sand.u32 %s159, 1
        %s266 = scalar_lea.sflag [#allocation4], %s265
        %s267 = sand.u32 %s159, 1
        %s268 = smul.addr %s267, 32
        %s269 = scalar_lea.vmem [#allocation5], %s268
        %p270 = scmp.lt.s32.totalorder %s24, 1
        %s271 = scalar_select %p270, %s24, 1
        %p272 = scmp.lt.s32.totalorder %s25, 0
        %s273 = scalar_select %p272, %s25, 0
        %s274 = smul.addr %s271, 4
        %s275 = sadd.s32 %s273, %s274
        %s276 = smul.addr %s275, 8
        %s277 = scalar_lea.vmem %s0, %s276
        %p278 = scmp.lt.s32.totalorder %s24, 1
        %s279 = scalar_select %p278, %s24, 1
        %s280 = smul.addr %s279, 4
        %s281 = smul.addr %s280, 8
        %s282 = scalar_lea.vmem %s1, %s281
        %v283 = vld [vmem:[%s282] sm:$0xff]
        %v284 = vld [vmem:[%s282 + $0x8] sm:$0xff]
        %v285 = vld [vmem:[%s282 + $0x10] sm:$0xff]
        %v286 = vld [vmem:[%s282 + $0x18] sm:$0xff]
        %v287 = vld [vmem:[%s2] sm:$0xff]
        %v288 = vld [vmem:[%s2 + $0x8] sm:$0xff]
        %v289 = vld [vmem:[%s2 + $0x10] sm:$0xff]
        %v290 = vld [vmem:[%s2 + $0x18] sm:$0xff]
        %vm291 = vcmask 261120
        %v293 = vsel %vm291, %v287, 0
        %v296 = vsel %vm291, %v288, 0
        %v299 = vsel %vm291, %v289, 0
        %v302 = vsel %vm291, %v290, 0
        %304 = vmatpush.msra.mxu0 0.0
        %305 = vmatpush.msra.mxu0 0.0
        %306 = vmatpush.msra.mxu0 0.0
        %307 = vmatpush.msra.mxu0 0.0
        %308 = vmatpush.msra.mxu0 0.0
        %309 = vmatpush.msra.mxu0 0.0
        %310 = vmatpush.msra.mxu0 0.0
        %311 = vmatpush.msra.mxu0 0.0
        %312 = vmatpush.msra.mxu0 0.0
        %313 = vmatpush.msra.mxu0 0.0
        %314 = vmatpush.msra.mxu0 0.0
        %315 = vmatpush.msra.mxu0 0.0
        %316 = vmatpush.msra.mxu0 %v286
        %317 = vmatpush.msra.mxu0 %v285
        %318 = vmatpush.msra.mxu0 %v284
        %319 = vmatpush.msra.mxu0 %v283
        %320 = vmatmul.f32.gmra.mxu0 %v293
        %v321 = vpop.f32.mrf.mxu0
        %v322 = vadd.f32 0.0, %v321
        %323 = vmatmul.f32.gmra.mxu0 %v296
        %v324 = vpop.f32.mrf.mxu0
        %v325 = vadd.f32 0.0, %v324
        %326 = vmatmul.f32.gmra.mxu0 %v299
        %v327 = vpop.f32.mrf.mxu0
        %v328 = vadd.f32 0.0, %v327
        %329 = vmatmul.f32.gmra.mxu0 %v302
        %v330 = vpop.f32.mrf.mxu0
        %v331 = vadd.f32 0.0, %v330
        %332 = vdwg.mxu0
        %v333 = vld [vmem:[#allocation2] sm:$0xf]
        %vm334 = vcmask 31744
        %v336 = vsel %vm334, %v322, 0
        %v339 = vsel %vm334, %v325, 0
        %v342 = vsel %vm334, %v328, 0
        %v345 = vsel %vm334, %v331, 0
        %vm347 = vcmask 1043456
        %v349 = vsel %vm347, %v333, 0
        %351 = vmatpush.msra.mxu0 0.0
        %352 = vmatpush.msra.mxu0 0.0
        %353 = vmatpush.msra.mxu0 0.0
        %354 = vmatpush.msra.mxu0 0.0
        %355 = vmatpush.msra.mxu0 0.0
        %356 = vmatpush.msra.mxu0 0.0
        %357 = vmatpush.msra.mxu0 0.0
        %358 = vmatpush.msra.mxu0 0.0
        %359 = vmatpush.msra.mxu0 0.0
        %360 = vmatpush.msra.mxu0 0.0
        %361 = vmatpush.msra.mxu0 0.0
        %362 = vmatpush.msra.mxu0 0.0
        %363 = vmatpush.msra.mxu0 0.0
        %364 = vmatpush.msra.mxu0 0.0
        %365 = vmatpush.msra.mxu0 0.0
        %366 = vmatpush.msra.mxu0 %v349
        %367 = vmatmul.f32.gmra.mxu0 %v336
        %v368 = vpop.f32.mrf.mxu0
        %v369 = vadd.f32 0.0, %v368
        %370 = vmatmul.f32.gmra.mxu0 %v339
        %v371 = vpop.f32.mrf.mxu0
        %v372 = vadd.f32 0.0, %v371
        %373 = vmatmul.f32.gmra.mxu0 %v342
        %v374 = vpop.f32.mrf.mxu0
        %v375 = vadd.f32 0.0, %v374
        %376 = vmatmul.f32.gmra.mxu0 %v345
        %v377 = vpop.f32.mrf.mxu0
        %v378 = vadd.f32 0.0, %v377
        %379 = vdwg.mxu0
        %v380 = vld [vmem:[%s277] sm:$0xff]
        %v381 = vld [vmem:[%s277 + $0x8] sm:$0xff]
        %v382 = vld [vmem:[%s277 + $0x10] sm:$0xff]
        %v383 = vld [vmem:[%s277 + $0x18] sm:$0xff]
        %v384 = vadd.f32 %v380, %v369
        %v385 = vadd.f32 %v381, %v372
        %v386 = vadd.f32 %v382, %v375
        %v387 = vadd.f32 %v383, %v378
        %v388 = vld [vmem:[%s3] sm:$0xff]
        %v389 = vld [vmem:[%s3 + $0x8] sm:$0xff]
        %v390 = vld [vmem:[%s3 + $0x10] sm:$0xff]
        %v391 = vld [vmem:[%s3 + $0x18] sm:$0xff]
        %393 = vset.pattern.permute.xlu0 0
        %394 = vperm.xlu0 %393, %v388
        %v395 = vpop.permute.xlu0 %394
        %398 = vset.pattern.permute.xlu0 0
        %399 = vperm.xlu0 %398, %v389
        %v400 = vpop.permute.xlu0 %399
        %403 = vset.pattern.permute.xlu0 0
        %404 = vperm.xlu0 %403, %v390
        %v405 = vpop.permute.xlu0 %404
        %408 = vset.pattern.permute.xlu0 0
        %409 = vperm.xlu0 %408, %v391
        %v410 = vpop.permute.xlu0 %409
        %v412 = vadd.f32 %v384, %v395
        %v413 = vadd.f32 %v385, %v400
        %v414 = vadd.f32 %v386, %v405
        %v415 = vadd.f32 %v387, %v410
        %vm416 = vcmask 523264
        %417 = vst.msk [vmem:[%s269] sm:$0xff] %vm416, %v412
        %418 = vst.msk [vmem:[%s269 + $0x8] sm:$0xff] %vm416, %v413
        %419 = vst.msk [vmem:[%s269 + $0x10] sm:$0xff] %vm416, %v414
        %420 = vst.msk [vmem:[%s269 + $0x18] sm:$0xff] %vm416, %v415
        %s421 = sand.u32 %s159, 1
        %s422 = scalar_lea.sflag [#allocation4], %s421
        %s423 = sand.u32 %s159, 1
        %s424 = smul.addr %s423, 32
        %s425 = scalar_lea.vmem [#allocation5], %s424
        // Predicated region
        $region45: #{tpu_custom_call.1} parent=39 // pred_check
          %p426 = pneg %p169
        $region46: #{tpu_custom_call.1} parent=39 // pred_check_branch
          %428 = sbr.rel (%p426) target = $region48
        $region47: #{tpu_custom_call.1} parent=39 // pred_region
          %430 = vsyncadd %s422, 0
          %s431 = smul.addr %s24, 4
          %s432 = sadd.s32 %s25, %s431
          %s433 = smul.addr %s432, 8
          %s434 = scalar_lea.hbm %s5, %s433
          %s435 = sshll.u32 %s425, 4
          %s436 = int_to_ptr.vmem [resolvable:$true] %s435
          %s437 = sshll.u32 %s434, 4
          %s438 = int_to_ptr.hbm [resolvable:$true] %s437
          %443 = dma.vmem_to_hbm [thread:$0]  %s436, 512, %s438, %s422, 128, 128, 8
        $region48: #{tpu_custom_call.1} parent=39 // pred_fallthru
          _
      $region40: #{tpu_custom_call.1} parent=5 // pred_fallthru
        _
      %p444 = scmp.le.s32.totalorder 2, %s15
      // Predicated region
      $region49: #{tpu_custom_call.1} parent=5 // pred_check
        %p445 = pneg %p444
      $region50: #{tpu_custom_call.1} parent=5 // pred_check_branch
        %447 = sbr.rel (%p445) target = $region52
      $region51: #{tpu_custom_call.1} parent=5 // pred_region
        %s448 = ssub.s32 %s15, 2
        // Predicated region
        $region53: #{tpu_custom_call.1} parent=51 // pred_check
          %p449 = pneg %p175
        $region54: #{tpu_custom_call.1} parent=51 // pred_check_branch
          %451 = sbr.rel (%p449) target = $region56
        $region55: #{tpu_custom_call.1} parent=51 // pred_region
          %s452 = sand.u32 %s160, 1
          %s453 = scalar_lea.sflag [#allocation4], %s452
          %s454 = sand.u32 %s160, 1
          %s455 = smul.addr %s454, 32
          %s456 = scalar_lea.vmem [#allocation5], %s455
          %458 = dma.done %s453, 512
        $region56: #{tpu_custom_call.1} parent=51 // pred_fallthru
          _
      $region52: #{tpu_custom_call.1} parent=5 // pred_fallthru
        _
    $region6: #{tpu_custom_call.1} parent=1 // loop_footer
      %s19 = sadd.s32 1, %s15
    $region7: #{tpu_custom_call.1} parent=1 // loop_footer_branch
      %14 = sbr.rel target = $region3
    $region8: #{tpu_custom_call.1} parent=1 // loop_exit
      _
    %459 = vsyncpa [#allocation3], 1
    %s460 = scalar_lea.sflag [#allocation3], 1
    %461 = vsyncpa %s460, 1
    %462 = vsyncpa [#allocation4], 1
    %s463 = scalar_lea.sflag [#allocation4], 1
    %464 = vsyncpa %s463, 1

</llo_original>
